<compile_context>
chip_gen: v7x
topology: tpu7x:2x2x1
jax: 0.10.0
libtpu: 0.0.40
codegen_flags: <defaults>
</compile_context>

<pallas_src>
import functools
import math

import jax
import jax.numpy as jnp
import numpy as np
from jax.experimental import pallas as pl
from jax.experimental.pallas import tpu as pltpu


def _masked_conv_relu_kernel(x_ref, w_ref, b_ref, o_ref, *, kH_eff, dilation, H):
    """Causal masked conv + bias + ReLU for one block of NB batch elements.

    x_ref : (NB, Hp, Wp*Cin)          top-padded, W-packed input (lanes = Wp*Cin)
    w_ref : (kH_eff, Wp*Cin, W*Cout)  banded weights (kW taps folded into columns)
    b_ref : (1, W*Cout)               bias tiled across W
    o_ref : (NB*H, W*Cout)            lane-dense output slab
    """
    NB = x_ref.shape[0]
    wp_cin = x_ref.shape[2]
    w_cout = o_ref.shape[1]
    M = NB * H

    acc = jnp.zeros((M, w_cout), dtype=jnp.float32)
    # Only the unmasked (causal) kernel rows kh = 0..kH//2 exist here; each row
    # is a single dense matmul (the kW taps live inside the banded weight).
    for kh in range(kH_eff):
        lhs = x_ref[:, kh * dilation: kh * dilation + H, :].reshape(M, wp_cin)
        acc = acc + jnp.dot(lhs, w_ref[kh], preferred_element_type=jnp.float32)

    acc = acc + b_ref[...].astype(jnp.float32)
    o_ref[...] = jnp.maximum(acc, 0.0).astype(o_ref.dtype)      # fused bias+ReLU


def conv_relu(x_nchw, weight_oihw, bias, *, dilation=1, groups=1):
    """Forward pass of Conv (MaskedConv2d + ReLU). Input/output are NCHW."""
    assert groups == 1  # TODO(synk): grouped conv not implemented in this kernel.
    N, Cin, H, W = x_nchw.shape
    Cout, Cin_w, kH, kW = weight_oihw.shape
    assert Cin_w == Cin
    assert kH % 2 == 1 and kW % 2 == 1, "'same' padding assumes odd kernel sizes"

    pad_h = dilation * (kH - 1) // 2           # H pad (target axis)
    pad_w = dilation * (kW - 1) // 2           # W pad (source axis), from kW
    kH_eff = kH // 2 + 1                       # causal mask zeroes rows > kH//2: drop them

    Hp = H + pad_h                             # top pad only: dropped rows never read bottom pad
    Wp = W + 2 * pad_w

    # ---- weights: drop masked rows, fold the kW taps into a banded 2D matrix ----
    # R[kh, wp*Cin + ci, w*Cout + co] = weight[co, ci, kh, kw]  iff  wp == w + kw*dilation
    w_eff = jnp.transpose(weight_oihw[:, :, :kH_eff, :], (2, 3, 1, 0))   # (kH_eff, kW, Cin, Cout)
    sel = np.zeros((kW, Wp, W), dtype=np.float32)
    for kw in range(kW):
        for w in range(W):
            sel[kw, w + kw * dilation, w] = 1.0
    r_banded = jnp.einsum("hkio,kpw->hpiwo", w_eff, jnp.asarray(sel, w_eff.dtype))
    r_banded = r_banded.reshape(kH_eff, Wp * Cin, W * Cout)

    b_row = jnp.tile(bias, W).reshape(1, W * Cout)

    # ---- input: NCHW -> NHWC, pad, pack W*Cin onto the lane axis (wrapper-side) ----
    x_nhwc = jnp.transpose(x_nchw, (0, 2, 3, 1))
    x_pad = jnp.pad(x_nhwc, ((0, 0), (pad_h, 0), (pad_w, pad_w), (0, 0)))
    x_packed = x_pad.reshape(N, Hp, Wp * Cin)

    NB = N                                     # fold the whole (small) batch into M
    assert N % NB == 0
    kernel = functools.partial(_masked_conv_relu_kernel,
                               kH_eff=kH_eff, dilation=dilation, H=H)

    out2d = pl.pallas_call(
        kernel,
        out_shape=jax.ShapeDtypeStruct((N * H, W * Cout), x_nchw.dtype),
        grid=(N // NB,),
        in_specs=[
            pl.BlockSpec((NB, Hp, Wp * Cin), lambda n: (n, 0, 0)),
            pl.BlockSpec((kH_eff, Wp * Cin, W * Cout), lambda n: (0, 0, 0)),
            pl.BlockSpec((1, W * Cout), lambda n: (0, 0)),
        ],
        out_specs=pl.BlockSpec((NB * H, W * Cout), lambda n: (n, 0)),
        compiler_params=pltpu.CompilerParams(
            dimension_semantics=("parallel",)),
    )(x_packed, r_banded, b_row)

    # lane-dense slab -> NCHW (layout plumbing stays in the wrapper)
    return jnp.transpose(out2d.reshape(N, H, W, Cout), (0, 3, 1, 2))


def _reference(x_nchw, weight_oihw, bias, *, dilation=1):
    """Plain-JAX reference of MaskedConv2d + ReLU for validation."""
    Cout, Cin, kH, kW = weight_oihw.shape
    mask = jnp.ones((1, 1, kH, kW), weight_oihw.dtype)
    mask = mask.at[:, :, kH // 2 + 1:, :].set(0.0)
    w_masked = weight_oihw * mask
    pad_h = dilation * (kH - 1) // 2
    pad_w = dilation * (kW - 1) // 2
    y = jax.lax.conv_general_dilated(
        x_nchw, w_masked,
        window_strides=(1, 1),
        padding=((pad_h, pad_h), (pad_w, pad_w)),
        rhs_dilation=(dilation, dilation),
        dimension_numbers=("NCHW", "OIHW", "NCHW"))
    y = y + bias[None, :, None, None]
    return jnp.maximum(y, 0.0)


if __name__ == "__main__":
    # Module config: Conv(in_channels=4, out_channels=8, kernel_size=3,
    #                     dilation=1, groups=1, bias=True)
    N, Cin, H, W = 2, 4, 16, 16
    Cout, k, dilation, groups = 8, 3, 1, 1

    key = jax.random.PRNGKey(0)
    kx, kw_, kb = jax.random.split(key, 3)

    x = jax.random.normal(kx, (N, Cin, H, W), dtype=jnp.float32)

    # Deterministic, torch-Conv2d-style uniform init (synthetic, no checkpoint).
    fan_in = Cin * k * k
    bound = 1.0 / math.sqrt(fan_in)
    weight = jax.random.uniform(kw_, (Cout, Cin, k, k),
                                minval=-bound, maxval=bound, dtype=jnp.float32)
    bias = jax.random.uniform(kb, (Cout,),
                              minval=-bound, maxval=bound, dtype=jnp.float32)

    out = conv_relu(x, weight, bias, dilation=dilation, groups=groups)
    out = jax.block_until_ready(out)

    ref = jax.block_until_ready(_reference(x, weight, bias, dilation=dilation))
    assert out.shape == (N, Cout, H, W)
    assert jnp.allclose(out, ref, atol=1e-5, rtol=1e-5)

    print("KERNEL_OK")
</pallas_src>

<mosaic_0001>
module attributes {stable_mosaic.version = 11 : i64} {
  func.func @_masked_conv_relu_kernel(%arg0: i32, %arg1: memref<2x17x72xf32, #tpu.memory_space<vmem>>, %arg2: memref<2x72x128xf32, #tpu.memory_space<vmem>>, %arg3: memref<1x128xf32, #tpu.memory_space<vmem>>, %arg4: memref<32x128xf32, #tpu.memory_space<vmem>>) attributes {dimension_semantics = [#tpu.dimension_semantics<parallel>], iteration_bounds = array<i64: 1>, scalar_prefetch = 0 : i64, scratch_operands = 0 : i64, tpu.core_type = #tpu.core_type<tc>, window_params = [{transform_indices = @transform_0, window_bounds = array<i64: 2, 17, 72>}, {pipeline_mode = #tpu.pipeline_mode<synchronous>, transform_indices = @transform_1, window_bounds = array<i64: 2, 72, 128>}, {pipeline_mode = #tpu.pipeline_mode<synchronous>, transform_indices = @transform_2, window_bounds = array<i64: 1, 128>}, {transform_indices = @transform_3, window_bounds = array<i64: 32, 128>}]} {
    %cst = arith.constant 0.000000e+00 : f32
    %0 = vector.broadcast %cst : f32 to vector<32x128xf32>
    %c0 = arith.constant 0 : index
    %c0_0 = arith.constant 0 : index
    %c0_1 = arith.constant 0 : index
    %1 = vector.load %arg1[%c0, %c0_0, %c0_1] : memref<2x17x72xf32, #tpu.memory_space<vmem>>, vector<2x16x72xf32>
    %2 = vector.shape_cast %1 : vector<2x16x72xf32> to vector<32x72xf32>
    %c0_2 = arith.constant 0 : index
    %c0_3 = arith.constant 0 : index
    %c0_4 = arith.constant 0 : index
    %3 = vector.load %arg2[%c0_2, %c0_3, %c0_4] : memref<2x72x128xf32, #tpu.memory_space<vmem>>, vector<1x72x128xf32>
    %4 = vector.shape_cast %3 : vector<1x72x128xf32> to vector<72x128xf32>
    %cst_5 = arith.constant dense<0.000000e+00> : vector<32x128xf32>
    %5 = tpu.matmul %2, %4, %cst_5 {dimension_numbers = #tpu.dot_dimension_numbers<[1], [0], [0], [1], [0, 0, 1, 1], [], []>} : vector<32x72xf32>, vector<72x128xf32>, vector<32x128xf32> -> vector<32x128xf32>
    %6 = arith.addf %0, %5 : vector<32x128xf32>
    %c0_6 = arith.constant 0 : index
    %c1 = arith.constant 1 : index
    %c0_7 = arith.constant 0 : index
    %7 = vector.load %arg1[%c0_6, %c1, %c0_7] : memref<2x17x72xf32, #tpu.memory_space<vmem>>, vector<2x16x72xf32>
    %8 = vector.shape_cast %7 : vector<2x16x72xf32> to vector<32x72xf32>
    %c1_8 = arith.constant 1 : index
    %c0_9 = arith.constant 0 : index
    %c0_10 = arith.constant 0 : index
    %9 = vector.load %arg2[%c1_8, %c0_9, %c0_10] : memref<2x72x128xf32, #tpu.memory_space<vmem>>, vector<1x72x128xf32>
    %10 = vector.shape_cast %9 : vector<1x72x128xf32> to vector<72x128xf32>
    %cst_11 = arith.constant dense<0.000000e+00> : vector<32x128xf32>
    %11 = tpu.matmul %8, %10, %cst_11 {dimension_numbers = #tpu.dot_dimension_numbers<[1], [0], [0], [1], [0, 0, 1, 1], [], []>} : vector<32x72xf32>, vector<72x128xf32>, vector<32x128xf32> -> vector<32x128xf32>
    %12 = arith.addf %6, %11 : vector<32x128xf32>
    %c0_12 = arith.constant 0 : index
    %c0_13 = arith.constant 0 : index
    %13 = vector.load %arg3[%c0_12, %c0_13] : memref<1x128xf32, #tpu.memory_space<vmem>>, vector<1x128xf32>
    %14 = vector.broadcast %13 : vector<1x128xf32> to vector<32x128xf32>
    %15 = arith.addf %12, %14 : vector<32x128xf32>
    %cst_14 = arith.constant 0.000000e+00 : f32
    %16 = vector.broadcast %cst_14 : f32 to vector<32x128xf32>
    %17 = arith.maximumf %15, %16 : vector<32x128xf32>
    %c0_15 = arith.constant 0 : index
    %c0_16 = arith.constant 0 : index
    %18 = vector.load %arg4[%c0_15, %c0_16] : memref<32x128xf32, #tpu.memory_space<vmem>>, vector<32x128xf32>
    tpu.vector_store %arg4[%c0_15, %c0_16], %17 {strides = array<i32>} : memref<32x128xf32, #tpu.memory_space<vmem>>, vector<32x128xf32>,
    return
  }
  func.func @transform_0(%arg0: i32) -> (i32, i32, i32) {
    %c0_i32 = arith.constant 0 : i32
    %c0_i32_0 = arith.constant 0 : i32
    %c0_i32_1 = arith.constant 0 : i32
    return %arg0, %c0_i32, %c0_i32_0 : i32, i32, i32
  }
  func.func @transform_1(%arg0: i32) -> (i32, i32, i32) {
    %c0_i32 = arith.constant 0 : i32
    %c0_i32_0 = arith.constant 0 : i32
    %c0_i32_1 = arith.constant 0 : i32
    %c0_i32_2 = arith.constant 0 : i32
    return %c0_i32, %c0_i32_0, %c0_i32_1 : i32, i32, i32
  }
  func.func @transform_2(%arg0: i32) -> (i32, i32) {
    %c0_i32 = arith.constant 0 : i32
    %c0_i32_0 = arith.constant 0 : i32
    %c0_i32_1 = arith.constant 0 : i32
    return %c0_i32, %c0_i32_0 : i32, i32
  }
  func.func @transform_3(%arg0: i32) -> (i32, i32) {
    %c0_i32 = arith.constant 0 : i32
    %c0_i32_0 = arith.constant 0 : i32
    return %arg0, %c0_i32 : i32, i32
  }
}

</mosaic_0001>

<llo_original>
// kernel: tpu_custom_call.1
$region0: #{tpu_custom_call.1}
  #allocation0 [shape = 'u32[]', space=smem, size = 0x4, offset = 0x4, fixed_abs, tag = 'smem constant byte address 0x4 - core index']
  #allocation1 [shape = 'u32[144,128]{1,0:T(1,128)}', space=vmem, size = 0x12000, scoped, tag = 'internal scratch']
  %s0 = inlined_call_operand.vmem [shape: f32[2,17,72], index: 0, kind: input, shape index: {}]
  %s1 = inlined_call_operand.hbm [shape: f32[2,72,128], index: 1, kind: input, shape index: {}]
  %s2 = inlined_call_operand.vmem [shape: f32[1,128], index: 2, kind: input, shape index: {}]
  %s3 = inlined_call_operand.hbm [shape: f32[32,128], index: 3, kind: output, shape index: {}]
  %s4 = sld [smem:[#allocation0]]
  $region26: #{tpu_custom_call.1} parent=0
    _
  %s6 = ssub.s32 1, %s4
  %s7 = scalar_select 0, %s6, %s4
  $region1: #{tpu_custom_call.1} parent=0
    #allocation2 [shape = 'u8[73728]{0}', space=vmem, size = 0x12000, scoped, tag = 'input window, operand 1, single buffered']
    #allocation3 [shape = 's32[1]{0}', space=sflag, size = 0x4, scoped, tag = 'scoped memory for tpu_custom_call.1']
    #allocation4 [shape = 's32[1]{0}', space=sflag, size = 0x4, scoped, tag = 'scoped memory for tpu_custom_call.1']
    #allocation5 [shape = 'u8[16384]{0}', space=vmem, size = 0x4000, scoped, tag = 'output window, operand 0, single buffered']
    %8 = vsyncpa [#allocation3], 0
    %9 = vsyncpa [#allocation4], 0
    // Predicated region
    $region2: #{tpu_custom_call.1} parent=1 // pred_check
      _
    $region3: #{tpu_custom_call.1} parent=1 // pred_check_branch
      %11 = sbr.rel (0) target = $region5
    $region4: #{tpu_custom_call.1} parent=1 // pred_region
      _
    $region5: #{tpu_custom_call.1} parent=1 // pred_fallthru
      _
    // Predicated region
    $region6: #{tpu_custom_call.1} parent=1 // pred_check
      _
    $region7: #{tpu_custom_call.1} parent=1 // pred_check_branch
      %13 = sbr.rel (0) target = $region9
    $region8: #{tpu_custom_call.1} parent=1 // pred_region
      %s15 = ssub.s32 2304, 2304
      %16 = vsyncadd [#allocation3], %s15
      %s17 = sshll.u32 [#allocation2], 4
      %s18 = int_to_ptr.vmem [resolvable:$true] %s17
      %23 = dma.hbm_to_vmem [thread:$0]  %s1, 2304, %s18, [#allocation3], 128, 128, 8
    $region9: #{tpu_custom_call.1} parent=1 // pred_fallthru
      _
    // Predicated region
    $region10: #{tpu_custom_call.1} parent=1 // pred_check
      _
    $region11: #{tpu_custom_call.1} parent=1 // pred_check_branch
      %25 = sbr.rel (0) target = $region13
    $region12: #{tpu_custom_call.1} parent=1 // pred_region
      _
    $region13: #{tpu_custom_call.1} parent=1 // pred_fallthru
      _
    // Predicated region
    $region14: #{tpu_custom_call.1} parent=1 // pred_check
      _
    $region15: #{tpu_custom_call.1} parent=1 // pred_check_branch
      %27 = sbr.rel (0) target = $region17
    $region16: #{tpu_custom_call.1} parent=1 // pred_region
      %28 = dma.done [#allocation3], 2304
    $region17: #{tpu_custom_call.1} parent=1 // pred_fallthru
      _
    %v29 = vld [vmem:[%s0] sm:$0xff]
    %v30 = vld [vmem:[%s0 + $0x8] sm:$0xff]
    %v31 = vld [vmem:[%s0 + $0x18] sm:$0xff]
    %v32 = vld [vmem:[%s0 + $0x20] sm:$0xff]
    %v33 = vld [vmem:[#allocation2] sm:$0xff]
    %v34 = vld [vmem:[#allocation2 + $0x8] sm:$0xff]
    %v35 = vld [vmem:[#allocation2 + $0x10] sm:$0xff]
    %v36 = vld [vmem:[#allocation2 + $0x18] sm:$0xff]
    %v37 = vld [vmem:[#allocation2 + $0x20] sm:$0xff]
    %v38 = vld [vmem:[#allocation2 + $0x28] sm:$0xff]
    %v39 = vld [vmem:[#allocation2 + $0x30] sm:$0xff]
    %v40 = vld [vmem:[#allocation2 + $0x38] sm:$0xff]
    %v41 = vld [vmem:[#allocation2 + $0x40] sm:$0xff]
    %v42 = vld [vmem:[%s0 + $0x1] sm:$0xff]
    %v43 = vld [vmem:[%s0 + $0x9] sm:$0xff]
    %v44 = vld [vmem:[%s0 + $0x19] sm:$0xff]
    %v45 = vld [vmem:[%s0 + $0x21] sm:$0xff]
    %s46 = scalar_lea.vmem [#allocation2], 72
    %v47 = vld [vmem:[%s46] sm:$0xff]
    %v48 = vld [vmem:[%s46 + $0x8] sm:$0xff]
    %v49 = vld [vmem:[%s46 + $0x10] sm:$0xff]
    %v50 = vld [vmem:[%s46 + $0x18] sm:$0xff]
    %v51 = vld [vmem:[%s46 + $0x20] sm:$0xff]
    %v52 = vld [vmem:[%s46 + $0x28] sm:$0xff]
    %v53 = vld [vmem:[%s46 + $0x30] sm:$0xff]
    %v54 = vld [vmem:[%s46 + $0x38] sm:$0xff]
    %v55 = vld [vmem:[%s46 + $0x40] sm:$0xff]
    %vm56 = vcmask 588800
    %v58 = vsel %vm56, %v42, 0
    %v61 = vsel %vm56, %v43, 0
    %v64 = vsel %vm56, %v44, 0
    %v67 = vsel %vm56, %v45, 0
    %69 = vmatprep.subr.mxu0 0.0
    %70 = vmatpush1.msra.mxu0 %v47
    %71 = vmatprep.subr.mxu0 0.0
    %72 = vmatpush1.msra.mxu0 %v48
    %73 = vmatprep.subr.mxu0 0.0
    %74 = vmatpush1.msra.mxu0 %v49
    %75 = vmatprep.subr.mxu0 0.0
    %76 = vmatpush1.msra.mxu0 %v50
    %77 = vmatprep.subr.mxu0 0.0
    %78 = vmatpush1.msra.mxu0 %v51
    %79 = vmatprep.subr.mxu0 0.0
    %80 = vmatpush1.msra.mxu0 %v52
    %81 = vmatprep.subr.mxu0 0.0
    %82 = vmatpush1.msra.mxu0 %v53
    %83 = vmatprep.subr.mxu0 0.0
    %84 = vmatpush1.msra.mxu0 %v54
    %85 = vmatprep.subr.mxu0 0.0
    %86 = vmatpush1.msra.mxu0 %v55
    %87 = vmatprep.subr.mxu0 0.0
    %88 = vmatpush1.msra.mxu0 0.0
    %89 = vmatprep.subr.mxu0 0.0
    %90 = vmatpush1.msra.mxu0 0.0
    %91 = vmatprep.subr.mxu0 0.0
    %92 = vmatpush1.msra.mxu0 0.0
    %93 = vmatprep.subr.mxu0 0.0
    %94 = vmatpush1.msra.mxu0 0.0
    %95 = vmatprep.subr.mxu0 0.0
    %96 = vmatpush1.msra.mxu0 0.0
    %97 = vmatprep.subr.mxu0 0.0
    %98 = vmatpush1.msra.mxu0 0.0
    %99 = vmatprep.subr.mxu0 0.0
    %100 = vmatpush1.msra.mxu0 0.0
    %101 = vmatprep.subr.mxu0 0.0
    %102 = vmatpush1.msra.mxu0 0.0
    %103 = vmatprep.subr.mxu0 0.0
    %104 = vmatpush1.msra.mxu0 0.0
    %105 = vmatprep.subr.mxu0 0.0
    %106 = vmatpush1.msra.mxu0 0.0
    %107 = vmatprep.subr.mxu0 0.0
    %108 = vmatpush1.msra.mxu0 0.0
    %109 = vmatprep.subr.mxu0 0.0
    %110 = vmatpush1.msra.mxu0 0.0
    %111 = vmatprep.subr.mxu0 0.0
    %112 = vmatpush1.msra.mxu0 0.0
    %113 = vmatprep.subr.mxu0 0.0
    %114 = vmatpush1.msra.mxu0 0.0
    %115 = vmatprep.subr.mxu0 0.0
    %116 = vmatpush1.msra.mxu0 0.0
    %117 = vmatprep.subr.mxu0 0.0
    %118 = vmatpush1.msra.mxu0 0.0
    %119 = vmatprep.subr.mxu0 0.0
    %120 = vmatpush1.msra.mxu0 0.0
    %121 = vmatprep.subr.mxu0 0.0
    %122 = vmatpush1.msra.mxu0 0.0
    %123 = vmatprep.subr.mxu0 0.0
    %124 = vmatpush1.msra.mxu0 0.0
    %125 = vmatprep.subr.mxu0 0.0
    %126 = vmatpush1.msra.mxu0 0.0
    %127 = vmatprep.subr.mxu0 0.0
    %128 = vmatpush1.msra.mxu0 0.0
    %129 = vmatprep.subr.mxu0 0.0
    %130 = vmatpush1.msra.mxu0 0.0
    %131 = vmatprep.subr.mxu0 0.0
    %132 = vmatpush1.msra.mxu0 0.0
    %133 = vmatprep.mubr.f32.mxu0 0.0
    %134 = vmatmul.mubr.f32.gmra.mrb[0].mxu0 %v58
    %v135 = vpop.f32.mrb[0].mxu0
    %v136 = vadd.f32 0.0, %v135
    %v137 = vpop.f32.mrb[0].mxu0
    %138 = vmatprep.mubr.f32.mxu0 0.0
    %139 = vmatmul.mubr.f32.gmra.mrb[0].mxu0 %v61
    %v140 = vpop.f32.mrb[0].mxu0
    %v141 = vadd.f32 0.0, %v140
    %v142 = vpop.f32.mrb[0].mxu0
    %143 = vmatprep.mubr.f32.mxu0 0.0
    %144 = vmatmul.mubr.f32.gmra.mrb[0].mxu0 %v64
    %v145 = vpop.f32.mrb[0].mxu0
    %v146 = vadd.f32 0.0, %v145
    %v147 = vpop.f32.mrb[0].mxu0
    %148 = vmatprep.mubr.f32.mxu0 0.0
    %149 = vmatmul.mubr.f32.gmra.mrb[0].mxu0 %v67
    %v150 = vpop.f32.mrb[0].mxu0
    %v151 = vadd.f32 0.0, %v150
    %v152 = vpop.f32.mrb[0].mxu0
    %153 = vdwg.mxu0
    %v155 = vsel %vm56, %v29, 0
    %v158 = vsel %vm56, %v30, 0
    %v161 = vsel %vm56, %v31, 0
    %v164 = vsel %vm56, %v32, 0
    %166 = vmatprep.subr.mxu0 0.0
    %167 = vmatpush1.msra.mxu0 %v33
    %168 = vmatprep.subr.mxu0 0.0
    %169 = vmatpush1.msra.mxu0 %v34
    %170 = vmatprep.subr.mxu0 0.0
    %171 = vmatpush1.msra.mxu0 %v35
    %172 = vmatprep.subr.mxu0 0.0
    %173 = vmatpush1.msra.mxu0 %v36
    %174 = vmatprep.subr.mxu0 0.0
    %175 = vmatpush1.msra.mxu0 %v37
    %176 = vmatprep.subr.mxu0 0.0
    %177 = vmatpush1.msra.mxu0 %v38
    %178 = vmatprep.subr.mxu0 0.0
    %179 = vmatpush1.msra.mxu0 %v39
    %180 = vmatprep.subr.mxu0 0.0
    %181 = vmatpush1.msra.mxu0 %v40
    %182 = vmatprep.subr.mxu0 0.0
    %183 = vmatpush1.msra.mxu0 %v41
    %184 = vmatprep.subr.mxu0 0.0
    %185 = vmatpush1.msra.mxu0 0.0
    %186 = vmatprep.subr.mxu0 0.0
    %187 = vmatpush1.msra.mxu0 0.0
    %188 = vmatprep.subr.mxu0 0.0
    %189 = vmatpush1.msra.mxu0 0.0
    %190 = vmatprep.subr.mxu0 0.0
    %191 = vmatpush1.msra.mxu0 0.0
    %192 = vmatprep.subr.mxu0 0.0
    %193 = vmatpush1.msra.mxu0 0.0
    %194 = vmatprep.subr.mxu0 0.0
    %195 = vmatpush1.msra.mxu0 0.0
    %196 = vmatprep.subr.mxu0 0.0
    %197 = vmatpush1.msra.mxu0 0.0
    %198 = vmatprep.subr.mxu0 0.0
    %199 = vmatpush1.msra.mxu0 0.0
    %200 = vmatprep.subr.mxu0 0.0
    %201 = vmatpush1.msra.mxu0 0.0
    %202 = vmatprep.subr.mxu0 0.0
    %203 = vmatpush1.msra.mxu0 0.0
    %204 = vmatprep.subr.mxu0 0.0
    %205 = vmatpush1.msra.mxu0 0.0
    %206 = vmatprep.subr.mxu0 0.0
    %207 = vmatpush1.msra.mxu0 0.0
    %208 = vmatprep.subr.mxu0 0.0
    %209 = vmatpush1.msra.mxu0 0.0
    %210 = vmatprep.subr.mxu0 0.0
    %211 = vmatpush1.msra.mxu0 0.0
    %212 = vmatprep.subr.mxu0 0.0
    %213 = vmatpush1.msra.mxu0 0.0
    %214 = vmatprep.subr.mxu0 0.0
    %215 = vmatpush1.msra.mxu0 0.0
    %216 = vmatprep.subr.mxu0 0.0
    %217 = vmatpush1.msra.mxu0 0.0
    %218 = vmatprep.subr.mxu0 0.0
    %219 = vmatpush1.msra.mxu0 0.0
    %220 = vmatprep.subr.mxu0 0.0
    %221 = vmatpush1.msra.mxu0 0.0
    %222 = vmatprep.subr.mxu0 0.0
    %223 = vmatpush1.msra.mxu0 0.0
    %224 = vmatprep.subr.mxu0 0.0
    %225 = vmatpush1.msra.mxu0 0.0
    %226 = vmatprep.subr.mxu0 0.0
    %227 = vmatpush1.msra.mxu0 0.0
    %228 = vmatprep.subr.mxu0 0.0
    %229 = vmatpush1.msra.mxu0 0.0
    %230 = vmatprep.mubr.f32.mxu0 0.0
    %231 = vmatmul.mubr.f32.gmra.mrb[0].mxu0 %v155
    %v232 = vpop.f32.mrb[0].mxu0
    %v233 = vadd.f32 %v136, %v232
    %v234 = vpop.f32.mrb[0].mxu0
    %235 = vmatprep.mubr.f32.mxu0 0.0
    %236 = vmatmul.mubr.f32.gmra.mrb[0].mxu0 %v158
    %v237 = vpop.f32.mrb[0].mxu0
    %v238 = vadd.f32 %v141, %v237
    %v239 = vpop.f32.mrb[0].mxu0
    %240 = vmatprep.mubr.f32.mxu0 0.0
    %241 = vmatmul.mubr.f32.gmra.mrb[0].mxu0 %v161
    %v242 = vpop.f32.mrb[0].mxu0
    %v243 = vadd.f32 %v146, %v242
    %v244 = vpop.f32.mrb[0].mxu0
    %245 = vmatprep.mubr.f32.mxu0 0.0
    %246 = vmatmul.mubr.f32.gmra.mrb[0].mxu0 %v164
    %v247 = vpop.f32.mrb[0].mxu0
    %v248 = vadd.f32 %v151, %v247
    %v249 = vpop.f32.mrb[0].mxu0
    %250 = vdwg.mxu0
    %v251 = vld [vmem:[%s2] sm:$0x1]
    %v253 = vlaneseq
    %v254 = vshrl.u32 %v253, 7
    %v255 = vsub.s32 0, %v254
    %v256 = vrot.slane %v251, %v255
    %v258 = vadd.f32 %v233, %v256
    %v259 = vadd.f32 %v238, %v256
    %v260 = vadd.f32 %v243, %v256
    %v261 = vadd.f32 %v248, %v256
    %v262 = vmax.f32 %v258, 0.0
    %v263 = vmax.f32 %v259, 0.0
    %v264 = vmax.f32 %v260, 0.0
    %v265 = vmax.f32 %v261, 0.0
    %266 = vst [vmem:[#allocation5] sm:$0xff] %v262
    %267 = vst [vmem:[#allocation5 + $0x8] sm:$0xff] %v263
    %268 = vst [vmem:[#allocation5 + $0x10] sm:$0xff] %v264
    %269 = vst [vmem:[#allocation5 + $0x18] sm:$0xff] %v265
    // Predicated region
    $region18: #{tpu_custom_call.1} parent=1 // pred_check
      _
    $region19: #{tpu_custom_call.1} parent=1 // pred_check_branch
      %271 = sbr.rel (0) target = $region21
    $region20: #{tpu_custom_call.1} parent=1 // pred_region
      %s273 = ssub.s32 512, 512
      %274 = vsyncadd [#allocation4], %s273
      %s275 = sshll.u32 [#allocation5], 4
      %s276 = int_to_ptr.vmem [resolvable:$true] %s275
      %281 = dma.vmem_to_hbm [thread:$0]  %s276, 512, %s3, [#allocation4], 128, 128, 8
    $region21: #{tpu_custom_call.1} parent=1 // pred_fallthru
      _
    // Predicated region
    $region22: #{tpu_custom_call.1} parent=1 // pred_check
      _
    $region23: #{tpu_custom_call.1} parent=1 // pred_check_branch
      %283 = sbr.rel (0) target = $region25
    $region24: #{tpu_custom_call.1} parent=1 // pred_region
      %284 = dma.done [#allocation4], 512
    $region25: #{tpu_custom_call.1} parent=1 // pred_fallthru
      _
    %285 = vsyncpa [#allocation3], 1
    %286 = vsyncpa [#allocation4], 1

</llo_original>
